<compile_context>
chip_gen: v7x
topology: tpu7x:2x2x1
jax: 0.10.0
libtpu: 0.0.40
codegen_flags: <defaults>
</compile_context>

<pallas_src>
import functools

import jax
import jax.numpy as jnp
from jax import lax
from jax.experimental import pallas as pl
from jax.experimental.pallas import tpu as pltpu


# ----------------------------- tiling helpers -------------------------------

def _pick_tile(n, cap, quantum):
    """Largest divisor of n that is <= cap and a multiple of quantum; else n (full)."""
    if n <= cap:
        return n
    c = (cap // quantum) * quantum
    while c >= quantum:
        if n % c == 0:
            return c
        c -= quantum
    return n


def _head_group_width(C, D):
    """Smallest head-group lane width that divides C and is a multiple of 128.

    Falls back to the full hidden width C (block == full last dim) when no such
    grouping exists (e.g. toy shapes with C < 128)."""
    H = C // D
    for hg in range(1, H + 1):
        gw = hg * D
        if C % gw == 0 and gw % 128 == 0:
            return gw
    return C


# ----------------------------- Conv1D kernel --------------------------------

def _conv1d_kernel(x_ref, w_ref, b_ref, o_ref, *, mxu_dtype):
    """One (tm, tn) output tile of y = x @ W + b (full K per step)."""
    acc = jnp.dot(
        x_ref[...].astype(mxu_dtype),
        w_ref[...].astype(mxu_dtype),
        preferred_element_type=jnp.float32,
    )
    o_ref[...] = (acc + b_ref[...]).astype(o_ref.dtype)


def conv1d(x2d, w, b, *, mxu_dtype=jnp.float32, tm_cap=256, tn_cap=512):
    """HF Conv1D: x2d (M, Cin) @ w (Cin, Cout) + b (Cout,) -> (M, Cout), tiled."""
    M, Cin = x2d.shape
    Cout = w.shape[1]
    tm = _pick_tile(M, tm_cap, 8)       # sublane-quantized M tile
    tn = _pick_tile(Cout, tn_cap, 128)  # lane-dense Cout tile
    grid = (M // tm, Cout // tn)

    cost = pl.CostEstimate(
        flops=2 * M * Cin * Cout,
        transcendentals=0,
        bytes_accessed=4 * (M * Cin + Cin * Cout + M * Cout + Cout),
    )

    return pl.pallas_call(
        functools.partial(_conv1d_kernel, mxu_dtype=mxu_dtype),
        out_shape=jax.ShapeDtypeStruct((M, Cout), jnp.float32),
        grid=grid,
        in_specs=[
            pl.BlockSpec((tm, Cin), lambda i, j: (i, 0)),
            pl.BlockSpec((Cin, tn), lambda i, j: (0, j)),
            pl.BlockSpec((1, tn), lambda i, j: (0, j)),
        ],
        out_specs=pl.BlockSpec((tm, tn), lambda i, j: (i, j)),
        compiler_params=pltpu.CompilerParams(
            dimension_semantics=("parallel", "parallel")
        ),
        cost_estimate=cost,
    )(x2d, w, b.reshape(1, Cout))


# --------------------------- flash attention kernel --------------------------

def _flash_attn_kernel(q_ref, k_ref, v_ref, o_ref, m_sc, l_sc, acc_sc, *,
                       scale, masked_bias, tq, tk, head_dim, nh, mxu_dtype):
    """One (batch, head_group, q_tile, kv_tile) step of causal flash attention.

    q_ref: (1, tq, nh*D), k_ref/v_ref: (1, tk, nh*D), o_ref: (1, tq, nh*D).
    Scratch m/l/acc hold the online-softmax state per head in the group.
    Matches Attention._attn: scores [/ sqrt(D)], tril mask via -10000.0,
    softmax(dim=-1), probs @ v.  Dropout / head_mask omitted (eval, None)."""
    qi = pl.program_id(2)
    ki = pl.program_id(3)
    D = head_dim

    @pl.when(ki == 0)
    def _init():
        m_sc[...] = jnp.full(m_sc.shape, -jnp.inf, dtype=m_sc.dtype)
        l_sc[...] = jnp.zeros(l_sc.shape, dtype=l_sc.dtype)
        acc_sc[...] = jnp.zeros(acc_sc.shape, dtype=acc_sc.dtype)

    # Skip kv blocks that lie entirely above the causal diagonal (their DMAs are
    # also suppressed via clamped index_maps in the wrapper).
    @pl.when(ki * tk < (qi + 1) * tq)
    def _compute():
        rows = qi * tq + lax.broadcasted_iota(jnp.int32, (tq, tk), 0)
        cols = ki * tk + lax.broadcasted_iota(jnp.int32, (tq, tk), 1)
        causal = cols <= rows

        inv_sqrt_d = 1.0 / float(D) ** 0.5

        for j in range(nh):
            sl = slice(j * D, (j + 1) * D)
            q = q_ref[0, :, sl].astype(jnp.float32)
            if scale:
                q = q * jnp.float32(inv_sqrt_d)   # fold 1/sqrt(D) into q (O(T*D))
            k = k_ref[0, :, sl]
            v = v_ref[0, :, sl]

            # q @ k^T without materializing a transpose.
            s = lax.dot_general(
                q.astype(mxu_dtype), k.astype(mxu_dtype),
                dimension_numbers=(((1,), (1,)), ((), ())),
                preferred_element_type=jnp.float32,
            )                                                    # (tq, tk)
            s = jnp.where(causal, s, jnp.float32(masked_bias))

            m_prev = m_sc[j]                                     # (tq, 1)
            m_new = jnp.maximum(m_prev, jnp.max(s, axis=-1, keepdims=True))
            alpha = jnp.exp(m_prev - m_new)
            p = jnp.exp(s - m_new)

            l_sc[j] = alpha * l_sc[j] + jnp.sum(p, axis=-1, keepdims=True)
            acc_sc[j] = alpha * acc_sc[j] + jnp.dot(
                p.astype(mxu_dtype), v.astype(mxu_dtype),
                preferred_element_type=jnp.float32,
            )
            m_sc[j] = m_new

    @pl.when(ki == pl.num_programs(3) - 1)
    def _finalize():
        parts = [acc_sc[j] * pl.reciprocal(l_sc[j], approx=True) for j in range(nh)]
        out = parts[0] if nh == 1 else jnp.concatenate(parts, axis=-1)
        o_ref[0] = out.astype(o_ref.dtype)   # lane-dense merged-head store


def flash_causal_attention(qkv, n_head, *, scale, mxu_dtype=jnp.float32,
                           tq_cap=256, tk_cap=256):
    """qkv: (B, T, 3C) fused projection -> merged-head attention output (B, T, C)."""
    B, T, threeC = qkv.shape
    C = threeC // 3
    H = n_head
    D = C // H

    gw = _head_group_width(C, D)   # lane width of one head group (mult of 128, or C)
    nh = gw // D                   # heads handled per grid step
    G = C // gw                    # number of head groups

    tq = _pick_tile(T, tq_cap, 8)
    tk = _pick_tile(T, tk_cap, 8)
    nq, nk = T // tq, T // tk

    kernel = functools.partial(
        _flash_attn_kernel, scale=scale, masked_bias=-10000.0,
        tq=tq, tk=tk, head_dim=D, nh=nh, mxu_dtype=mxu_dtype)

    def kv_block(qi, ki):
        # Clamp the kv block index to the last causally-needed block for this q tile:
        # above-diagonal steps then re-present the previous block, so Pallas skips
        # the redundant HBM DMA entirely (the kernel also skips compute via pl.when).
        return jnp.minimum(ki, ((qi + 1) * tq - 1) // tk)

    if gw % 128 == 0:
        # Lane-dense head-group blocks: index q/k/v straight out of (B, T, 3C),
        # no split copies, no head transposes.
        q_in = k_in = v_in = qkv
        q_spec = pl.BlockSpec((1, tq, gw), lambda b, g, qi, ki: (b, qi, g))
        k_spec = pl.BlockSpec((1, tk, gw),
                              lambda b, g, qi, ki: (b, kv_block(qi, ki), G + g))
        v_spec = pl.BlockSpec((1, tk, gw),
                              lambda b, g, qi, ki: (b, kv_block(qi, ki), 2 * G + g))
    else:
        # Toy shapes (C < 128): fall back to full-C blocks on split q/k/v
        # (still no head transposes; block last dim == full array dim).
        q_in, k_in, v_in = jnp.split(qkv, 3, axis=2)
        q_spec = pl.BlockSpec((1, tq, gw), lambda b, g, qi, ki: (b, qi, g))
        k_spec = pl.BlockSpec((1, tk, gw),
                              lambda b, g, qi, ki: (b, kv_block(qi, ki), g))
        v_spec = pl.BlockSpec((1, tk, gw),
                              lambda b, g, qi, ki: (b, kv_block(qi, ki), g))

    out_spec = pl.BlockSpec((1, tq, gw), lambda b, g, qi, ki: (b, qi, g))

    cost = pl.CostEstimate(
        flops=4 * B * H * T * T * D,          # qk^T + pv (causal skip halves at run time)
        transcendentals=B * H * T * T,        # exp
        bytes_accessed=4 * 4 * B * T * C,     # read q,k,v + write out (f32)
    )

    return pl.pallas_call(
        kernel,
        out_shape=jax.ShapeDtypeStruct((B, T, C), jnp.float32),
        grid=(B, G, nq, nk),
        in_specs=[q_spec, k_spec, v_spec],
        out_specs=out_spec,
        scratch_shapes=[
            pltpu.VMEM((nh, tq, 1), jnp.float32),   # running row max m
            pltpu.VMEM((nh, tq, 1), jnp.float32),   # running row sum l
            pltpu.VMEM((nh, tq, D), jnp.float32),   # output accumulator
        ],
        compiler_params=pltpu.CompilerParams(
            dimension_semantics=("parallel", "parallel", "parallel", "arbitrary")
        ),
        cost_estimate=cost,
    )(q_in, k_in, v_in)


# ----------------------------- module wrapper --------------------------------

class AttentionPallas:
    """JAX/Pallas port of the GPT-2 `Attention` module (self-attention path)."""

    def __init__(self, nx, n_ctx, n_head, *, scale=True,
                 mxu_dtype=jnp.float32, key=jax.random.PRNGKey(0)):
        assert nx % n_head == 0
        self.nx = nx
        self.n_ctx = n_ctx
        self.n_head = n_head
        self.head_dim = nx // n_head
        self.scale = scale
        # mxu_dtype=jnp.bfloat16 is recommended on v6e/v7x for MXU throughput
        # (accumulation stays f32); default f32 matches the PyTorch reference.
        self.mxu_dtype = mxu_dtype

        k1, k2 = jax.random.split(key)
        # HF Conv1D init: weight ~ N(0, 0.02), bias = 0; weight shape (Cin, Cout).
        self.c_attn_w = (0.02 * jax.random.normal(k1, (nx, 3 * nx))).astype(jnp.float32)
        self.c_attn_b = jnp.zeros((3 * nx,), jnp.float32)
        self.c_proj_w = (0.02 * jax.random.normal(k2, (nx, nx))).astype(jnp.float32)
        self.c_proj_b = jnp.zeros((nx,), jnp.float32)

    def __call__(self, hidden_states):
        B, T, C = hidden_states.shape
        assert C == self.nx and T <= self.n_ctx

        # Fused qkv projection (tiled Pallas matmul); keep (B, T, 3C) layout.
        qkv = conv1d(hidden_states.reshape(B * T, C), self.c_attn_w, self.c_attn_b,
                     mxu_dtype=self.mxu_dtype).reshape(B, T, 3 * C)

        # Flash-style causal attention; output already in merged (B, T, C) layout
        # (no split_heads / merge_heads transposes through HBM).
        a = flash_causal_attention(qkv, self.n_head, scale=self.scale,
                                   mxu_dtype=self.mxu_dtype)

        # Output projection (tiled Pallas matmul).
        a = conv1d(a.reshape(B * T, C), self.c_proj_w, self.c_proj_b,
                   mxu_dtype=self.mxu_dtype).reshape(B, T, C)

        # TODO(synk): attn_dropout / resid_dropout omitted (eval mode); use_cache
        # present-stacking and cross-attention branch not implemented.
        present = None
        return a, present


# ----------------------------- reference check -------------------------------

def _reference_forward(hidden_states, attn):
    """Pure-JAX mirror of the PyTorch Attention forward (self-attn, eval)."""
    B, T, C = hidden_states.shape
    H, D = attn.n_head, attn.head_dim
    qkv = hidden_states.reshape(B * T, C) @ attn.c_attn_w + attn.c_attn_b
    q, k, v = jnp.split(qkv.reshape(B, T, 3 * C), 3, axis=2)

    def split_heads(x):
        return x.reshape(B, T, H, D).transpose(0, 2, 1, 3)

    q, k, v = split_heads(q), split_heads(k), split_heads(v)
    w = jnp.einsum('bhqd,bhkd->bhqk', q, k)
    if attn.scale:
        w = w / jnp.sqrt(jnp.float32(D))
    mask = jnp.tril(jnp.ones((T, T), dtype=bool))
    w = jnp.where(mask, w, jnp.float32(-10000.0))
    w = jax.nn.softmax(w, axis=-1)
    a = jnp.einsum('bhqk,bhkd->bhqd', w, v)
    a = a.transpose(0, 2, 1, 3).reshape(B * T, C)
    return (a @ attn.c_proj_w + attn.c_proj_b).reshape(B, T, C)


if __name__ == "__main__":
    B, T, C, H = 2, 8, 32, 4   # batch, seq, hidden, heads (head_dim = 8)
    n_ctx = 16

    key = jax.random.PRNGKey(0)
    k_x, k_params = jax.random.split(key)
    hidden_states = jax.random.normal(k_x, (B, T, C), dtype=jnp.float32)

    attn = AttentionPallas(nx=C, n_ctx=n_ctx, n_head=H, scale=True, key=k_params)
    out, _ = attn(hidden_states)
    out = jax.block_until_ready(out)

    assert out.shape == (B, T, C) and out.dtype == jnp.float32
    assert bool(jnp.all(jnp.isfinite(out)))

    ref = _reference_forward(hidden_states, attn)
    assert bool(jnp.allclose(out, ref, rtol=1e-2, atol=1e-3)), (
        float(jnp.max(jnp.abs(out - ref))))

    print("KERNEL_OK")
</pallas_src>

<mosaic_0001>
module attributes {stable_mosaic.version = 11 : i64} {
  func.func @_conv1d_kernel(%arg0: i32, %arg1: i32, %arg2: memref<16x32xf32, #tpu.memory_space<vmem>>, %arg3: memref<32x96xf32, #tpu.memory_space<vmem>>, %arg4: memref<1x96xf32, #tpu.memory_space<vmem>>, %arg5: memref<16x96xf32, #tpu.memory_space<vmem>>) attributes {dimension_semantics = [#tpu.dimension_semantics<parallel>, #tpu.dimension_semantics<parallel>], iteration_bounds = array<i64: 1, 1>, scalar_prefetch = 0 : i64, scratch_operands = 0 : i64, tpu.core_type = #tpu.core_type<tc>, window_params = [{transform_indices = @transform_0, window_bounds = array<i64: 16, 32>}, {transform_indices = @transform_1, window_bounds = array<i64: 32, 96>}, {transform_indices = @transform_2, window_bounds = array<i64: 1, 96>}, {transform_indices = @transform_3, window_bounds = array<i64: 16, 96>}]} {
    %c0 = arith.constant 0 : index
    %c0_0 = arith.constant 0 : index
    %0 = vector.load %arg2[%c0, %c0_0] : memref<16x32xf32, #tpu.memory_space<vmem>>, vector<16x32xf32>
    %c0_1 = arith.constant 0 : index
    %c0_2 = arith.constant 0 : index
    %1 = vector.load %arg3[%c0_1, %c0_2] : memref<32x96xf32, #tpu.memory_space<vmem>>, vector<32x96xf32>
    %cst = arith.constant dense<0.000000e+00> : vector<16x96xf32>
    %2 = tpu.matmul %0, %1, %cst {dimension_numbers = #tpu.dot_dimension_numbers<[1], [0], [0], [1], [0, 0, 1, 1], [], []>} : vector<16x32xf32>, vector<32x96xf32>, vector<16x96xf32> -> vector<16x96xf32>
    %c0_3 = arith.constant 0 : index
    %c0_4 = arith.constant 0 : index
    %3 = vector.load %arg4[%c0_3, %c0_4] : memref<1x96xf32, #tpu.memory_space<vmem>>, vector<1x96xf32>
    %4 = vector.broadcast %3 : vector<1x96xf32> to vector<16x96xf32>
    %5 = arith.addf %2, %4 : vector<16x96xf32>
    %c0_5 = arith.constant 0 : index
    %c0_6 = arith.constant 0 : index
    %6 = vector.load %arg5[%c0_5, %c0_6] : memref<16x96xf32, #tpu.memory_space<vmem>>, vector<16x96xf32>
    tpu.vector_store %arg5[%c0_5, %c0_6], %5 {strides = array<i32>} : memref<16x96xf32, #tpu.memory_space<vmem>>, vector<16x96xf32>,
    return
  }
  func.func @transform_0(%arg0: i32, %arg1: i32) -> (i32, i32) {
    %c0_i32 = arith.constant 0 : i32
    %c0_i32_0 = arith.constant 0 : i32
    return %arg0, %c0_i32 : i32, i32
  }
  func.func @transform_1(%arg0: i32, %arg1: i32) -> (i32, i32) {
    %c0_i32 = arith.constant 0 : i32
    %c0_i32_0 = arith.constant 0 : i32
    return %c0_i32, %arg1 : i32, i32
  }
  func.func @transform_2(%arg0: i32, %arg1: i32) -> (i32, i32) {
    %c0_i32 = arith.constant 0 : i32
    %c0_i32_0 = arith.constant 0 : i32
    return %c0_i32, %arg1 : i32, i32
  }
  func.func @transform_3(%arg0: i32, %arg1: i32) -> (i32, i32) {
    %c0_i32 = arith.constant 0 : i32
    return %arg0, %arg1 : i32, i32
  }
}

</mosaic_0001>

<llo_original>
// kernel: tpu_custom_call.1
$region0: #{tpu_custom_call.1}
  #allocation0 [shape = 'u32[]', space=smem, size = 0x4, offset = 0x4, fixed_abs, tag = 'smem constant byte address 0x4 - core index']
  #allocation1 [shape = 'u32[144,128]{1,0:T(1,128)}', space=vmem, size = 0x12000, scoped, tag = 'internal scratch']
  %s0 = inlined_call_operand.hbm [shape: f32[16,32], index: 0, kind: input, shape index: {}]
  %s1 = inlined_call_operand.hbm [shape: f32[32,96], index: 1, kind: input, shape index: {}]
  %s2 = inlined_call_operand.vmem [shape: f32[1,96], index: 2, kind: input, shape index: {}]
  %s3 = inlined_call_operand.hbm [shape: f32[16,96], index: 3, kind: output, shape index: {}]
  %s4 = sld [smem:[#allocation0]]
  $region30: #{tpu_custom_call.1} parent=0
    _
  %s6 = ssub.s32 1, %s4
  %s7 = scalar_select 0, %s6, %s4
  $region1: #{tpu_custom_call.1} parent=0
    #allocation2 [shape = 'u8[8192]{0}', space=vmem, size = 0x2000, scoped, tag = 'input window, operand 0, single buffered']
    #allocation3 [shape = 's32[1]{0}', space=sflag, size = 0x4, scoped, tag = 'scoped memory for tpu_custom_call.1']
    #allocation4 [shape = 's32[1]{0}', space=sflag, size = 0x4, scoped, tag = 'scoped memory for tpu_custom_call.1']
    #allocation5 [shape = 'u8[16384]{0}', space=vmem, size = 0x4000, scoped, tag = 'input window, operand 1, single buffered']
    #allocation6 [shape = 's32[1]{0}', space=sflag, size = 0x4, scoped, tag = 'scoped memory for tpu_custom_call.1']
    #allocation7 [shape = 'u8[8192]{0}', space=vmem, size = 0x2000, scoped, tag = 'output window, operand 0, single buffered']
    %8 = vsyncpa [#allocation3], 0
    %9 = vsyncpa [#allocation6], 0
    %10 = vsyncpa [#allocation4], 0
    // Predicated region
    $region2: #{tpu_custom_call.1} parent=1 // pred_check
      _
    $region3: #{tpu_custom_call.1} parent=1 // pred_check_branch
      %12 = sbr.rel (0) target = $region5
    $region4: #{tpu_custom_call.1} parent=1 // pred_region
      %s14 = ssub.s32 256, 256
      %15 = vsyncadd [#allocation3], %s14
      %s16 = sshll.u32 [#allocation2], 4
      %s17 = int_to_ptr.vmem [resolvable:$true] %s16
      %22 = dma.hbm_to_vmem [thread:$0]  %s0, 256, %s17, [#allocation3], 128, 128, 8
    $region5: #{tpu_custom_call.1} parent=1 // pred_fallthru
      _
    // Predicated region
    $region6: #{tpu_custom_call.1} parent=1 // pred_check
      _
    $region7: #{tpu_custom_call.1} parent=1 // pred_check_branch
      %24 = sbr.rel (0) target = $region9
    $region8: #{tpu_custom_call.1} parent=1 // pred_region
      %s26 = ssub.s32 512, 512
      %27 = vsyncadd [#allocation6], %s26
      %s28 = sshll.u32 [#allocation5], 4
      %s29 = int_to_ptr.vmem [resolvable:$true] %s28
      %34 = dma.hbm_to_vmem [thread:$0]  %s1, 512, %s29, [#allocation6], 128, 128, 8
    $region9: #{tpu_custom_call.1} parent=1 // pred_fallthru
      _
    // Predicated region
    $region10: #{tpu_custom_call.1} parent=1 // pred_check
      _
    $region11: #{tpu_custom_call.1} parent=1 // pred_check_branch
      %36 = sbr.rel (0) target = $region13
    $region12: #{tpu_custom_call.1} parent=1 // pred_region
      _
    $region13: #{tpu_custom_call.1} parent=1 // pred_fallthru
      _
    // Predicated region
    $region14: #{tpu_custom_call.1} parent=1 // pred_check
      _
    $region15: #{tpu_custom_call.1} parent=1 // pred_check_branch
      %38 = sbr.rel (0) target = $region17
    $region16: #{tpu_custom_call.1} parent=1 // pred_region
      %39 = dma.done [#allocation3], 256
    $region17: #{tpu_custom_call.1} parent=1 // pred_fallthru
      _
    // Predicated region
    $region18: #{tpu_custom_call.1} parent=1 // pred_check
      _
    $region19: #{tpu_custom_call.1} parent=1 // pred_check_branch
      %41 = sbr.rel (0) target = $region21
    $region20: #{tpu_custom_call.1} parent=1 // pred_region
      %42 = dma.done [#allocation6], 512
    $region21: #{tpu_custom_call.1} parent=1 // pred_fallthru
      _
    %v43 = vld [vmem:[#allocation2] sm:$0xff]
    %v44 = vld [vmem:[#allocation2 + $0x8] sm:$0xff]
    %v45 = vld [vmem:[#allocation5] sm:$0xff]
    %v46 = vld [vmem:[#allocation5 + $0x8] sm:$0xff]
    %v47 = vld [vmem:[#allocation5 + $0x10] sm:$0xff]
    %v48 = vld [vmem:[#allocation5 + $0x18] sm:$0xff]
    %v49 = vld [vmem:[%s2] sm:$0x1]
    %v51 = vlaneseq
    %v52 = vshrl.u32 %v51, 7
    %v53 = vsub.s32 0, %v52
    %v54 = vrot.slane %v49, %v53
    %vm56 = vcmask 261120
    %v58 = vsel %vm56, %v43, 0
    %v61 = vsel %vm56, %v44, 0
    %63 = vmatprep.subr.mxu0 0.0
    %64 = vmatpush1.msra.mxu0 %v45
    %65 = vmatprep.subr.mxu0 0.0
    %66 = vmatpush1.msra.mxu0 %v46
    %67 = vmatprep.subr.mxu0 0.0
    %68 = vmatpush1.msra.mxu0 %v47
    %69 = vmatprep.subr.mxu0 0.0
    %70 = vmatpush1.msra.mxu0 %v48
    %71 = vmatprep.subr.mxu0 0.0
    %72 = vmatpush1.msra.mxu0 0.0
    %73 = vmatprep.subr.mxu0 0.0
    %74 = vmatpush1.msra.mxu0 0.0
    %75 = vmatprep.subr.mxu0 0.0
    %76 = vmatpush1.msra.mxu0 0.0
    %77 = vmatprep.subr.mxu0 0.0
    %78 = vmatpush1.msra.mxu0 0.0
    %79 = vmatprep.subr.mxu0 0.0
    %80 = vmatpush1.msra.mxu0 0.0
    %81 = vmatprep.subr.mxu0 0.0
    %82 = vmatpush1.msra.mxu0 0.0
    %83 = vmatprep.subr.mxu0 0.0
    %84 = vmatpush1.msra.mxu0 0.0
    %85 = vmatprep.subr.mxu0 0.0
    %86 = vmatpush1.msra.mxu0 0.0
    %87 = vmatprep.subr.mxu0 0.0
    %88 = vmatpush1.msra.mxu0 0.0
    %89 = vmatprep.subr.mxu0 0.0
    %90 = vmatpush1.msra.mxu0 0.0
    %91 = vmatprep.subr.mxu0 0.0
    %92 = vmatpush1.msra.mxu0 0.0
    %93 = vmatprep.subr.mxu0 0.0
    %94 = vmatpush1.msra.mxu0 0.0
    %95 = vmatprep.subr.mxu0 0.0
    %96 = vmatpush1.msra.mxu0 0.0
    %97 = vmatprep.subr.mxu0 0.0
    %98 = vmatpush1.msra.mxu0 0.0
    %99 = vmatprep.subr.mxu0 0.0
    %100 = vmatpush1.msra.mxu0 0.0
    %101 = vmatprep.subr.mxu0 0.0
    %102 = vmatpush1.msra.mxu0 0.0
    %103 = vmatprep.subr.mxu0 0.0
    %104 = vmatpush1.msra.mxu0 0.0
    %105 = vmatprep.subr.mxu0 0.0
    %106 = vmatpush1.msra.mxu0 0.0
    %107 = vmatprep.subr.mxu0 0.0
    %108 = vmatpush1.msra.mxu0 0.0
    %109 = vmatprep.subr.mxu0 0.0
    %110 = vmatpush1.msra.mxu0 0.0
    %111 = vmatprep.subr.mxu0 0.0
    %112 = vmatpush1.msra.mxu0 0.0
    %113 = vmatprep.subr.mxu0 0.0
    %114 = vmatpush1.msra.mxu0 0.0
    %115 = vmatprep.subr.mxu0 0.0
    %116 = vmatpush1.msra.mxu0 0.0
    %117 = vmatprep.subr.mxu0 0.0
    %118 = vmatpush1.msra.mxu0 0.0
    %119 = vmatprep.subr.mxu0 0.0
    %120 = vmatpush1.msra.mxu0 0.0
    %121 = vmatprep.subr.mxu0 0.0
    %122 = vmatpush1.msra.mxu0 0.0
    %123 = vmatprep.subr.mxu0 0.0
    %124 = vmatpush1.msra.mxu0 0.0
    %125 = vmatprep.subr.mxu0 0.0
    %126 = vmatpush1.msra.mxu0 0.0
    %127 = vmatprep.mubr.f32.mxu0 0.0
    %128 = vmatmul.mubr.f32.gmra.mrb[0].mxu0 %v58
    %v129 = vpop.f32.mrb[0].mxu0
    %v130 = vadd.f32 %v54, %v129
    %v131 = vpop.f32.mrb[0].mxu0
    %132 = vmatprep.mubr.f32.mxu0 0.0
    %133 = vmatmul.mubr.f32.gmra.mrb[0].mxu0 %v61
    %v134 = vpop.f32.mrb[0].mxu0
    %v135 = vadd.f32 %v54, %v134
    %v136 = vpop.f32.mrb[0].mxu0
    %137 = vdwg.mxu0
    %vm138 = vcmask 785408
    %139 = vst.msk [vmem:[#allocation7] sm:$0xff] %vm138, %v130
    %140 = vst.msk [vmem:[#allocation7 + $0x8] sm:$0xff] %vm138, %v135
    // Predicated region
    $region22: #{tpu_custom_call.1} parent=1 // pred_check
      _
    $region23: #{tpu_custom_call.1} parent=1 // pred_check_branch
      %142 = sbr.rel (0) target = $region25
    $region24: #{tpu_custom_call.1} parent=1 // pred_region
      %s144 = ssub.s32 256, 256
      %145 = vsyncadd [#allocation4], %s144
      %s146 = sshll.u32 [#allocation7], 4
      %s147 = int_to_ptr.vmem [resolvable:$true] %s146
      %152 = dma.vmem_to_hbm [thread:$0]  %s147, 256, %s3, [#allocation4], 128, 128, 8
    $region25: #{tpu_custom_call.1} parent=1 // pred_fallthru
      _
    // Predicated region
    $region26: #{tpu_custom_call.1} parent=1 // pred_check
      _
    $region27: #{tpu_custom_call.1} parent=1 // pred_check_branch
      %154 = sbr.rel (0) target = $region29
    $region28: #{tpu_custom_call.1} parent=1 // pred_region
      %155 = dma.done [#allocation4], 256
    $region29: #{tpu_custom_call.1} parent=1 // pred_fallthru
      _
    %156 = vsyncpa [#allocation3], 1
    %157 = vsyncpa [#allocation6], 1
    %158 = vsyncpa [#allocation4], 1

</llo_original>
